<compile_context>
chip_gen: v7x
topology: tpu7x:2x2x1
jax: 0.10.0
libtpu: 0.0.40
codegen_flags: <defaults>
</compile_context>

<pallas_src>
import jax
import jax.numpy as jnp
from jax.experimental import pallas as pl
from jax.experimental.pallas import tpu as pltpu


def _double_reduce_kernel(x_ref, o_ref):
    # x_ref: (M, W) in natural layout; reduce over the lane axis (W) in-kernel.
    s = jnp.sum(x_ref[...], axis=-1, keepdims=True)   # (M, 1), XLU cross-lane reduce
    o_ref[...] = s + s                                 # sum(x + x) == sum(x) + sum(x)


def from_another_op_forward(x):
    """x: (B, C, H, W) float32.  Returns sum(x + x, dim=-1): (B, C, H)."""
    B, C, H, W = x.shape
    M = B * C * H

    # Contiguous reshape only (no transpose): free layout plumbing, no extra HLO
    # data movement.
    x2 = x.reshape(M, W)

    out = pl.pallas_call(
        _double_reduce_kernel,
        out_shape=jax.ShapeDtypeStruct((M, 1), x.dtype),
        # Single block, no grid: whole arrays resident in VMEM (32 KiB + 512 B).
        in_specs=[pl.BlockSpec(memory_space=pltpu.MemorySpace.VMEM)],
        out_specs=pl.BlockSpec(memory_space=pltpu.MemorySpace.VMEM),
    )(x2)

    # kwargs keepdim=False -> reduced axis dropped (another free reshape).
    return out.reshape(B, C, H)


if __name__ == "__main__":
    B, C, H, W = 2, 4, 16, 16
    value_range = (-1.0, 1.0)

    key = jax.random.PRNGKey(0)
    x = jax.random.uniform(key, (B, C, H, W), jnp.float32,
                           minval=value_range[0], maxval=value_range[1])

    out = from_another_op_forward(x)
    out = jax.block_until_ready(out)

    # Correctness check against the pure-JAX reference of the PyTorch forward.
    ref = jnp.sum(x + x, axis=-1)
    assert out.shape == (B, C, H)
    assert jnp.allclose(out, ref, atol=1e-5, rtol=1e-5)

    print("KERNEL_OK")
</pallas_src>

<mosaic_0001>
module attributes {stable_mosaic.version = 11 : i64} {
  func.func @_double_reduce_kernel(%arg0: memref<128x16xf32, #tpu.memory_space<vmem>>, %arg1: memref<128x1xf32, #tpu.memory_space<vmem>>) attributes {dimension_semantics = [], scalar_prefetch = 0 : i64, scratch_operands = 0 : i64, tpu.core_type = #tpu.core_type<tc>} {
    %c0 = arith.constant 0 : index
    %c0_0 = arith.constant 0 : index
    %0 = vector.load %arg0[%c0, %c0_0] : memref<128x16xf32, #tpu.memory_space<vmem>>, vector<128x16xf32>
    %cst = arith.constant dense<0.000000e+00> : vector<128xf32>
    %1 = vector.multi_reduction <add>, %0, %cst [1] : vector<128x16xf32> to vector<128xf32>
    %2 = vector.shape_cast %1 : vector<128xf32> to vector<128x1xf32>
    %3 = arith.addf %2, %2 : vector<128x1xf32>
    %c0_1 = arith.constant 0 : index
    %c0_2 = arith.constant 0 : index
    %4 = vector.load %arg1[%c0_1, %c0_2] : memref<128x1xf32, #tpu.memory_space<vmem>>, vector<128x1xf32>
    tpu.vector_store %arg1[%c0_1, %c0_2], %3 {strides = array<i32>} : memref<128x1xf32, #tpu.memory_space<vmem>>, vector<128x1xf32>,
    return
  }
}

</mosaic_0001>

<llo_original>
// kernel: tpu_custom_call.1
$region0: #{tpu_custom_call.1}
  #allocation0 [shape = 'u32[]', space=smem, size = 0x4, offset = 0x4, fixed_abs, tag = 'smem constant byte address 0x4 - core index']
  #allocation1 [shape = 'u32[144,128]{1,0:T(1,128)}', space=vmem, size = 0x12000, scoped, tag = 'internal scratch']
  %s0 = inlined_call_operand.vmem [shape: f32[128,16], index: 0, kind: input, shape index: {}]
  %s1 = inlined_call_operand.vmem [shape: f32[128,1], index: 1, kind: output, shape index: {}]
  %s2 = sld [smem:[#allocation0]]
  $region14: #{tpu_custom_call.1} parent=0
    _
  %s4 = ssub.s32 1, %s2
  %s5 = scalar_select 0, %s4, %s2
  // Predicated region
  $region2: #{tpu_custom_call.1} parent=0 // pred_check
    _
  $region3: #{tpu_custom_call.1} parent=0 // pred_check_branch
    %7 = sbr.rel (0) target = $region5
  $region4: #{tpu_custom_call.1} parent=0 // pred_region
    _
  $region5: #{tpu_custom_call.1} parent=0 // pred_fallthru
    _
  %v8 = vld [vmem:[%s0] sm:$0xff]
  %v9 = vld [vmem:[%s0 + $0x8] sm:$0xff]
  %v10 = vld [vmem:[%s0 + $0x10] sm:$0xff]
  %v11 = vld [vmem:[%s0 + $0x18] sm:$0xff]
  %v12 = vld [vmem:[%s0 + $0x20] sm:$0xff]
  %v13 = vld [vmem:[%s0 + $0x28] sm:$0xff]
  %v14 = vld [vmem:[%s0 + $0x30] sm:$0xff]
  %v15 = vld [vmem:[%s0 + $0x38] sm:$0xff]
  %v16 = vld [vmem:[%s0 + $0x40] sm:$0xff]
  %v17 = vld [vmem:[%s0 + $0x48] sm:$0xff]
  %v18 = vld [vmem:[%s0 + $0x50] sm:$0xff]
  %v19 = vld [vmem:[%s0 + $0x58] sm:$0xff]
  %v20 = vld [vmem:[%s0 + $0x60] sm:$0xff]
  %v21 = vld [vmem:[%s0 + $0x68] sm:$0xff]
  %v22 = vld [vmem:[%s0 + $0x70] sm:$0xff]
  %v23 = vld [vmem:[%s0 + $0x78] sm:$0xff]
  %vm24 = vcmask 130048
  %v25 = vsel %vm24, %v8, 0.0
  %26 = vadd.xlane.f32.xlu0 %v25
  %v27 = vpop.xlane.xlu0 %26
  %v28 = vsel %vm24, %v9, 0.0
  %29 = vadd.xlane.f32.xlu0 %v28
  %v30 = vpop.xlane.xlu0 %29
  %v31 = vsel %vm24, %v10, 0.0
  %32 = vadd.xlane.f32.xlu0 %v31
  %v33 = vpop.xlane.xlu0 %32
  %v34 = vsel %vm24, %v11, 0.0
  %35 = vadd.xlane.f32.xlu0 %v34
  %v36 = vpop.xlane.xlu0 %35
  %v37 = vsel %vm24, %v12, 0.0
  %38 = vadd.xlane.f32.xlu0 %v37
  %v39 = vpop.xlane.xlu0 %38
  %v40 = vsel %vm24, %v13, 0.0
  %41 = vadd.xlane.f32.xlu0 %v40
  %v42 = vpop.xlane.xlu0 %41
  %v43 = vsel %vm24, %v14, 0.0
  %44 = vadd.xlane.f32.xlu0 %v43
  %v45 = vpop.xlane.xlu0 %44
  %v46 = vsel %vm24, %v15, 0.0
  %47 = vadd.xlane.f32.xlu0 %v46
  %v48 = vpop.xlane.xlu0 %47
  %v49 = vsel %vm24, %v16, 0.0
  %50 = vadd.xlane.f32.xlu0 %v49
  %v51 = vpop.xlane.xlu0 %50
  %v52 = vsel %vm24, %v17, 0.0
  %53 = vadd.xlane.f32.xlu0 %v52
  %v54 = vpop.xlane.xlu0 %53
  %v55 = vsel %vm24, %v18, 0.0
  %56 = vadd.xlane.f32.xlu0 %v55
  %v57 = vpop.xlane.xlu0 %56
  %v58 = vsel %vm24, %v19, 0.0
  %59 = vadd.xlane.f32.xlu0 %v58
  %v60 = vpop.xlane.xlu0 %59
  %v61 = vsel %vm24, %v20, 0.0
  %62 = vadd.xlane.f32.xlu0 %v61
  %v63 = vpop.xlane.xlu0 %62
  %v64 = vsel %vm24, %v21, 0.0
  %65 = vadd.xlane.f32.xlu0 %v64
  %v66 = vpop.xlane.xlu0 %65
  %v67 = vsel %vm24, %v22, 0.0
  %68 = vadd.xlane.f32.xlu0 %v67
  %v69 = vpop.xlane.xlu0 %68
  %v70 = vsel %vm24, %v23, 0.0
  %71 = vadd.xlane.f32.xlu0 %v70
  %v72 = vpop.xlane.xlu0 %71
  %v73 = vadd.f32 %v27, %v27
  %v74 = vadd.f32 %v30, %v30
  %v75 = vadd.f32 %v33, %v33
  %v76 = vadd.f32 %v36, %v36
  %v77 = vadd.f32 %v39, %v39
  %v78 = vadd.f32 %v42, %v42
  %v79 = vadd.f32 %v45, %v45
  %v80 = vadd.f32 %v48, %v48
  %v81 = vadd.f32 %v51, %v51
  %v82 = vadd.f32 %v54, %v54
  %v83 = vadd.f32 %v57, %v57
  %v84 = vadd.f32 %v60, %v60
  %v85 = vadd.f32 %v63, %v63
  %v86 = vadd.f32 %v66, %v66
  %v87 = vadd.f32 %v69, %v69
  %v88 = vadd.f32 %v72, %v72
  %vm89 = vcmask 7168
  %90 = vst.msk [vmem:[%s1] sm:$0xff] %vm89, %v73
  %91 = vst.msk [vmem:[%s1 + $0x8] sm:$0xff] %vm89, %v74
  %92 = vst.msk [vmem:[%s1 + $0x10] sm:$0xff] %vm89, %v75
  %93 = vst.msk [vmem:[%s1 + $0x18] sm:$0xff] %vm89, %v76
  %94 = vst.msk [vmem:[%s1 + $0x20] sm:$0xff] %vm89, %v77
  %95 = vst.msk [vmem:[%s1 + $0x28] sm:$0xff] %vm89, %v78
  %96 = vst.msk [vmem:[%s1 + $0x30] sm:$0xff] %vm89, %v79
  %97 = vst.msk [vmem:[%s1 + $0x38] sm:$0xff] %vm89, %v80
  %98 = vst.msk [vmem:[%s1 + $0x40] sm:$0xff] %vm89, %v81
  %99 = vst.msk [vmem:[%s1 + $0x48] sm:$0xff] %vm89, %v82
  %100 = vst.msk [vmem:[%s1 + $0x50] sm:$0xff] %vm89, %v83
  %101 = vst.msk [vmem:[%s1 + $0x58] sm:$0xff] %vm89, %v84
  %102 = vst.msk [vmem:[%s1 + $0x60] sm:$0xff] %vm89, %v85
  %103 = vst.msk [vmem:[%s1 + $0x68] sm:$0xff] %vm89, %v86
  %104 = vst.msk [vmem:[%s1 + $0x70] sm:$0xff] %vm89, %v87
  %105 = vst.msk [vmem:[%s1 + $0x78] sm:$0xff] %vm89, %v88
  // Predicated region
  $region6: #{tpu_custom_call.1} parent=0 // pred_check
    _
  $region7: #{tpu_custom_call.1} parent=0 // pred_check_branch
    %107 = sbr.rel (0) target = $region9
  $region8: #{tpu_custom_call.1} parent=0 // pred_region
    _
  $region9: #{tpu_custom_call.1} parent=0 // pred_fallthru
    _
  // Predicated region
  $region10: #{tpu_custom_call.1} parent=0 // pred_check
    _
  $region11: #{tpu_custom_call.1} parent=0 // pred_check_branch
    %109 = sbr.rel (0) target = $region13
  $region12: #{tpu_custom_call.1} parent=0 // pred_region
    _
  $region13: #{tpu_custom_call.1} parent=0 // pred_fallthru
    _

</llo_original>
